<compile_context>
chip_gen: v5e
topology: v5e:2x2
jax: 0.10.0
libtpu: 0.0.40
codegen_flags: <defaults>
</compile_context>

<pallas_src>
from functools import partial

import jax
import jax.numpy as jnp
from jax.experimental import pallas as pl
from jax.experimental.pallas import tpu as pltpu

IN_DIM = 7
HID = 128
OUT_DIM = 4
LANE = 128   # lane pad / hidden width


# ---------------------------------------------------------------------------
# Kernel
# ---------------------------------------------------------------------------
def policy_kernel(x_ref, w_ref, b_ref, o_ref):
    # x_ref: (block_b, 128) f32, valid lanes [0:7]       (zero-padded)
    # w_ref: (3, 128, 128) bf16 stacked weights           (zero-padded)
    # b_ref: (3, 1, 128)   f32 stacked biases             (zero-padded)
    # o_ref: (block_b, 128) f32, valid lanes [0:4]
    x = x_ref[...].astype(jnp.bfloat16)

    # fc1 + relu  (zero-padded K lanes of x match zero-padded rows of w1)
    h1 = jnp.dot(x, w_ref[0], preferred_element_type=jnp.float32) + b_ref[0]
    h1 = jnp.maximum(h1, 0.0)

    # fc2 + relu
    h2 = jnp.dot(h1.astype(jnp.bfloat16), w_ref[1],
                 preferred_element_type=jnp.float32) + b_ref[1]
    h2 = jnp.maximum(h2, 0.0)

    # fc3
    logits = jnp.dot(h2.astype(jnp.bfloat16), w_ref[2],
                     preferred_element_type=jnp.float32) + b_ref[2]

    # softmax over the 4 valid logits (lane axis); padded lanes masked to -inf
    col = jax.lax.broadcasted_iota(jnp.int32, logits.shape, 1)
    masked = jnp.where(col < OUT_DIM, logits, -1e30)
    m = jnp.max(masked, axis=-1, keepdims=True)
    e = jnp.exp(masked - m)
    s = jnp.sum(e, axis=-1, keepdims=True)
    o_ref[...] = e / s


# ---------------------------------------------------------------------------
# One-time parameter preparation (pad + stack + bf16 cast)
# ---------------------------------------------------------------------------
def prepare_params(params):
    """Pad weights to (128,128), stack to (3,128,128) bf16 + (3,1,128) f32."""
    w1, b1, w2, b2, w3, b3 = params

    w_stack = jnp.zeros((3, LANE, LANE), jnp.float32)
    w_stack = w_stack.at[0, :IN_DIM, :].set(w1)      # fc1: 7  -> 128
    w_stack = w_stack.at[1, :, :].set(w2)            # fc2: 128-> 128
    w_stack = w_stack.at[2, :, :OUT_DIM].set(w3)     # fc3: 128-> 4
    w_stack = w_stack.astype(jnp.bfloat16)

    b_stack = jnp.zeros((3, 1, LANE), jnp.float32)
    b_stack = b_stack.at[0, 0, :].set(b1)
    b_stack = b_stack.at[1, 0, :].set(b2)
    b_stack = b_stack.at[2, 0, :OUT_DIM].set(b3)
    return w_stack, b_stack


# ---------------------------------------------------------------------------
# Forward (batched, jitted)
# ---------------------------------------------------------------------------
@partial(jax.jit, static_argnames=("block_b",))
def policy_forward(xs, w_stack, b_stack, *, block_b=128):
    """xs: (B, 7) f32 states -> (B, 4) action probabilities (softmax per row)."""
    B = xs.shape[0]
    assert B % block_b == 0, "batch must be a multiple of block_b"

    # Tiny lane pad of x (fused under jit); weight slab is already padded.
    x_p = jnp.zeros((B, LANE), jnp.float32).at[:, :IN_DIM].set(
        xs.astype(jnp.float32))

    out = pl.pallas_call(
        policy_kernel,
        out_shape=jax.ShapeDtypeStruct((B, LANE), jnp.float32),
        grid=(B // block_b,),
        in_specs=[
            pl.BlockSpec((block_b, LANE), lambda i: (i, 0)),        # states
            pl.BlockSpec((3, LANE, LANE), lambda i: (0, 0, 0)),     # weights (resident)
            pl.BlockSpec((3, 1, LANE), lambda i: (0, 0, 0)),        # biases  (resident)
        ],
        out_specs=pl.BlockSpec((block_b, LANE), lambda i: (i, 0)),
        compiler_params=pltpu.CompilerParams(
            dimension_semantics=("parallel",)),                     # 2 TCs on v7x
    )(x_p, w_stack, b_stack)

    return out[:, :OUT_DIM]


def policy_forward_single(x, w_stack, b_stack):
    """Single state (7,) -> (4,) probabilities (matches the PyTorch usage)."""
    xs = jnp.zeros((8, IN_DIM), jnp.float32).at[0].set(x.astype(jnp.float32))
    return policy_forward(xs, w_stack, b_stack, block_b=8)[0]


# ---------------------------------------------------------------------------
# Params / references
# ---------------------------------------------------------------------------
def init_params(key):
    """Deterministic init matching nn.Linear shapes (stored as (in, out))."""
    ks = jax.random.split(key, 6)

    def linear(kw, kb, fan_in, fan_out):
        bound = 1.0 / jnp.sqrt(float(fan_in))
        w = jax.random.uniform(kw, (fan_in, fan_out), jnp.float32, -bound, bound)
        b = jax.random.uniform(kb, (fan_out,), jnp.float32, -bound, bound)
        return w, b

    w1, b1 = linear(ks[0], ks[1], IN_DIM, HID)
    w2, b2 = linear(ks[2], ks[3], HID, HID)
    w3, b3 = linear(ks[4], ks[5], HID, OUT_DIM)
    return (w1, b1, w2, b2, w3, b3)


def policy_forward_ref(xs, params):
    """Pure-JAX f32 reference of the PyTorch forward (per-row softmax)."""
    w1, b1, w2, b2, w3, b3 = params
    h = jnp.maximum(xs @ w1 + b1, 0.0)
    h = jnp.maximum(h @ w2 + b2, 0.0)
    logits = h @ w3 + b3
    return jax.nn.softmax(logits, axis=-1)


def policy_forward_ref_bf16(xs, params):
    """Reference emulating the kernel's bf16-weight / f32-accumulate precision."""
    w1, b1, w2, b2, w3, b3 = params

    def dot_bf16(a, w):
        return jnp.dot(a.astype(jnp.bfloat16), w.astype(jnp.bfloat16),
                       preferred_element_type=jnp.float32)

    h = jnp.maximum(dot_bf16(xs, w1) + b1, 0.0)
    h = jnp.maximum(dot_bf16(h, w2) + b2, 0.0)
    logits = dot_bf16(h, w3) + b3
    return jax.nn.softmax(logits, axis=-1)


# TODO(synk): train_net (Adam update + REINFORCE loss backward) and Categorical
# sampling are host/training logic, not part of the forward pass, so they are
# not translated to Pallas.

if __name__ == "__main__":
    key = jax.random.PRNGKey(0)
    k_param, k_x = jax.random.split(key)

    params = init_params(k_param)
    w_stack, b_stack = prepare_params(params)   # pad/stack/bf16 ONCE

    # Batched rollout-style call: 256 states, 128-row blocks, 2 grid steps.
    B = 256
    xs = jax.random.normal(k_x, (B, IN_DIM), jnp.float32)

    probs = policy_forward(xs, w_stack, b_stack, block_b=128)
    probs = jax.block_until_ready(probs)
    assert probs.shape == (B, OUT_DIM)

    ref_bf16 = policy_forward_ref_bf16(xs, params)
    ref_f32 = policy_forward_ref(xs, params)
    assert jnp.allclose(probs, ref_bf16, atol=2e-3, rtol=1e-3), (
        jnp.max(jnp.abs(probs - ref_bf16)))
    assert jnp.allclose(probs, ref_f32, atol=3e-2, rtol=3e-2), (
        jnp.max(jnp.abs(probs - ref_f32)))
    assert jnp.allclose(jnp.sum(probs, axis=-1), 1.0, atol=1e-5)

    # Single-state path (matches `pi(torch.from_numpy(s).float())` usage).
    x1 = xs[0]
    p1 = jax.block_until_ready(policy_forward_single(x1, w_stack, b_stack))
    assert p1.shape == (OUT_DIM,)
    assert jnp.allclose(p1, probs[0], atol=1e-5)

    print("KERNEL_OK")
</pallas_src>

<mosaic_0001>
module attributes {stable_mosaic.version = 11 : i64} {
  func.func @policy_kernel(%arg0: i32, %arg1: memref<128x128xf32, #tpu.memory_space<vmem>>, %arg2: memref<3x128x128xbf16, #tpu.memory_space<vmem>>, %arg3: memref<3x1x128xf32, #tpu.memory_space<vmem>>, %arg4: memref<128x128xf32, #tpu.memory_space<vmem>>) attributes {dimension_semantics = [#tpu.dimension_semantics<parallel>], iteration_bounds = array<i64: 2>, scalar_prefetch = 0 : i64, scratch_operands = 0 : i64, tpu.core_type = #tpu.core_type<tc>, window_params = [{transform_indices = @transform_0, window_bounds = array<i64: 128, 128>}, {pipeline_mode = #tpu.pipeline_mode<synchronous>, transform_indices = @transform_1, window_bounds = array<i64: 3, 128, 128>}, {pipeline_mode = #tpu.pipeline_mode<synchronous>, transform_indices = @transform_2, window_bounds = array<i64: 3, 1, 128>}, {transform_indices = @transform_3, window_bounds = array<i64: 128, 128>}]} {
    %c0 = arith.constant 0 : index
    %c0_0 = arith.constant 0 : index
    %0 = vector.load %arg1[%c0, %c0_0] : memref<128x128xf32, #tpu.memory_space<vmem>>, vector<128x128xf32>
    %1 = arith.truncf %0 : vector<128x128xf32> to vector<128x128xbf16>
    %c0_1 = arith.constant 0 : index
    %c0_2 = arith.constant 0 : index
    %c0_3 = arith.constant 0 : index
    %2 = vector.load %arg2[%c0_1, %c0_2, %c0_3] : memref<3x128x128xbf16, #tpu.memory_space<vmem>>, vector<1x128x128xbf16>
    %3 = vector.shape_cast %2 : vector<1x128x128xbf16> to vector<128x128xbf16>
    %cst = arith.constant dense<0.000000e+00> : vector<128x128xf32>
    %4 = tpu.matmul %1, %3, %cst {dimension_numbers = #tpu.dot_dimension_numbers<[1], [0], [0], [1], [0, 0, 1, 1], [], []>} : vector<128x128xbf16>, vector<128x128xbf16>, vector<128x128xf32> -> vector<128x128xf32>
    %c0_4 = arith.constant 0 : index
    %c0_5 = arith.constant 0 : index
    %c0_6 = arith.constant 0 : index
    %5 = vector.load %arg3[%c0_4, %c0_5, %c0_6] : memref<3x1x128xf32, #tpu.memory_space<vmem>>, vector<1x1x128xf32>
    %6 = vector.shape_cast %5 : vector<1x1x128xf32> to vector<1x128xf32>
    %7 = vector.broadcast %6 : vector<1x128xf32> to vector<128x128xf32>
    %8 = arith.addf %4, %7 : vector<128x128xf32>
    %cst_7 = arith.constant 0.000000e+00 : f32
    %9 = vector.broadcast %cst_7 : f32 to vector<128x128xf32>
    %10 = arith.maximumf %8, %9 : vector<128x128xf32>
    %11 = arith.truncf %10 : vector<128x128xf32> to vector<128x128xbf16>
    %c1 = arith.constant 1 : index
    %c0_8 = arith.constant 0 : index
    %c0_9 = arith.constant 0 : index
    %12 = vector.load %arg2[%c1, %c0_8, %c0_9] : memref<3x128x128xbf16, #tpu.memory_space<vmem>>, vector<1x128x128xbf16>
    %13 = vector.shape_cast %12 : vector<1x128x128xbf16> to vector<128x128xbf16>
    %cst_10 = arith.constant dense<0.000000e+00> : vector<128x128xf32>
    %14 = tpu.matmul %11, %13, %cst_10 {dimension_numbers = #tpu.dot_dimension_numbers<[1], [0], [0], [1], [0, 0, 1, 1], [], []>} : vector<128x128xbf16>, vector<128x128xbf16>, vector<128x128xf32> -> vector<128x128xf32>
    %c1_11 = arith.constant 1 : index
    %c0_12 = arith.constant 0 : index
    %c0_13 = arith.constant 0 : index
    %15 = vector.load %arg3[%c1_11, %c0_12, %c0_13] : memref<3x1x128xf32, #tpu.memory_space<vmem>>, vector<1x1x128xf32>
    %16 = vector.shape_cast %15 : vector<1x1x128xf32> to vector<1x128xf32>
    %17 = vector.broadcast %16 : vector<1x128xf32> to vector<128x128xf32>
    %18 = arith.addf %14, %17 : vector<128x128xf32>
    %cst_14 = arith.constant 0.000000e+00 : f32
    %19 = vector.broadcast %cst_14 : f32 to vector<128x128xf32>
    %20 = arith.maximumf %18, %19 : vector<128x128xf32>
    %21 = arith.truncf %20 : vector<128x128xf32> to vector<128x128xbf16>
    %c2 = arith.constant 2 : index
    %c0_15 = arith.constant 0 : index
    %c0_16 = arith.constant 0 : index
    %22 = vector.load %arg2[%c2, %c0_15, %c0_16] : memref<3x128x128xbf16, #tpu.memory_space<vmem>>, vector<1x128x128xbf16>
    %23 = vector.shape_cast %22 : vector<1x128x128xbf16> to vector<128x128xbf16>
    %cst_17 = arith.constant dense<0.000000e+00> : vector<128x128xf32>
    %24 = tpu.matmul %21, %23, %cst_17 {dimension_numbers = #tpu.dot_dimension_numbers<[1], [0], [0], [1], [0, 0, 1, 1], [], []>} : vector<128x128xbf16>, vector<128x128xbf16>, vector<128x128xf32> -> vector<128x128xf32>
    %c2_18 = arith.constant 2 : index
    %c0_19 = arith.constant 0 : index
    %c0_20 = arith.constant 0 : index
    %25 = vector.load %arg3[%c2_18, %c0_19, %c0_20] : memref<3x1x128xf32, #tpu.memory_space<vmem>>, vector<1x1x128xf32>
    %26 = vector.shape_cast %25 : vector<1x1x128xf32> to vector<1x128xf32>
    %27 = vector.broadcast %26 : vector<1x128xf32> to vector<128x128xf32>
    %28 = arith.addf %24, %27 : vector<128x128xf32>
    %29 = tpu.iota {dimensions = array<i32: 1>} : vector<128x128xi32>
    %c4_i32 = arith.constant 4 : i32
    %30 = vector.broadcast %c4_i32 : i32 to vector<128x128xi32>
    %31 = arith.cmpi slt, %29, %30 : vector<128x128xi32>
    %cst_21 = arith.constant -1.000000e+30 : f32
    %32 = vector.broadcast %cst_21 : f32 to vector<128x128xf32>
    %33 = arith.select %31, %28, %32 : vector<128x128xi1>, vector<128x128xf32>
    %cst_22 = arith.constant dense<0xFF800000> : vector<128xf32>
    %34 = vector.multi_reduction <maximumf>, %33, %cst_22 [1] : vector<128x128xf32> to vector<128xf32>
    %35 = vector.shape_cast %34 : vector<128xf32> to vector<128x1xf32>
    %36 = vector.broadcast %35 : vector<128x1xf32> to vector<128x128xf32>
    %37 = arith.subf %33, %36 : vector<128x128xf32>
    %38 = math.exp %37 : vector<128x128xf32>
    %cst_23 = arith.constant dense<0.000000e+00> : vector<128xf32>
    %39 = vector.multi_reduction <add>, %38, %cst_23 [1] : vector<128x128xf32> to vector<128xf32>
    %40 = vector.shape_cast %39 : vector<128xf32> to vector<128x1xf32>
    %41 = vector.broadcast %40 : vector<128x1xf32> to vector<128x128xf32>
    %42 = arith.divf %38, %41 : vector<128x128xf32>
    %c0_24 = arith.constant 0 : index
    %c0_25 = arith.constant 0 : index
    %43 = vector.load %arg4[%c0_24, %c0_25] : memref<128x128xf32, #tpu.memory_space<vmem>>, vector<128x128xf32>
    tpu.vector_store %arg4[%c0_24, %c0_25], %42 {strides = array<i32>} : memref<128x128xf32, #tpu.memory_space<vmem>>, vector<128x128xf32>,
    return
  }
  func.func @transform_0(%arg0: i32) -> (i32, i32) {
    %c0_i32 = arith.constant 0 : i32
    %c0_i32_0 = arith.constant 0 : i32
    return %arg0, %c0_i32 : i32, i32
  }
  func.func @transform_1(%arg0: i32) -> (i32, i32, i32) {
    %c0_i32 = arith.constant 0 : i32
    %c0_i32_0 = arith.constant 0 : i32
    %c0_i32_1 = arith.constant 0 : i32
    %c0_i32_2 = arith.constant 0 : i32
    return %c0_i32, %c0_i32_0, %c0_i32_1 : i32, i32, i32
  }
  func.func @transform_2(%arg0: i32) -> (i32, i32, i32) {
    %c0_i32 = arith.constant 0 : i32
    %c0_i32_0 = arith.constant 0 : i32
    %c0_i32_1 = arith.constant 0 : i32
    %c0_i32_2 = arith.constant 0 : i32
    return %c0_i32, %c0_i32_0, %c0_i32_1 : i32, i32, i32
  }
  func.func @transform_3(%arg0: i32) -> (i32, i32) {
    %c0_i32 = arith.constant 0 : i32
    %c0_i32_0 = arith.constant 0 : i32
    return %arg0, %c0_i32 : i32, i32
  }
}

</mosaic_0001>

<llo_original>
// kernel: policy_forward.1
$region0: #{policy_forward.1}
  #allocation0 [shape = 'u32[]', space=smem, size = 0x4, offset = 0x4, fixed_abs, tag = 'smem constant byte address 0x4 - core index']
  #allocation1 [shape = 'u32[72,128]{1,0:T(1,128)}', space=vmem, size = 0x9000, scoped, tag = 'internal scratch']
  %s0 = inlined_call_operand.vmem [shape: f32[256,128], index: 0, kind: input, shape index: {}]
  %s1 = inlined_call_operand.vmem [shape: bf16[3,128,128], index: 1, kind: input, shape index: {}]
  %s2 = inlined_call_operand.vmem [shape: f32[3,1,128], index: 2, kind: input, shape index: {}]
  %s3 = inlined_call_operand.vmem [shape: f32[256,128], index: 3, kind: output, shape index: {}]
  %s4 = sld [smem:[#allocation0]]
  $region45: #{policy_forward.1} parent=0
    _
  %s6 = ssub.s32 1, %s4
  %s7 = scalar_select 0, %s6, %s4
  loop: start=0, step=1, limit=4
  $region2: #{policy_forward.1} parent=0 // loop_pre_header
    _
  $region3: #{policy_forward.1} parent=0 // loop_header
    %s9 = sphi 0, %s13
    %p10 = scmp.ge.s32.totalorder %s9, 4
    %s19 = sphi 0, %s21
    %s22 = sphi 0, %s19
    %s23 = sphi 0, %s22
    %s39 = sphi 0, %s23
    %s43 = sphi 0, %s43
    %s45 = sphi 0, %s43
    %s46 = sphi 0, %s45
    %s60 = sphi 0, %s46
    %s64 = sphi 0, %s64
    %s66 = sphi 0, %s64
    %s67 = sphi 0, %s66
    %s81 = sphi 0, %s67
    %s87 = sphi 0, %s89
    %s90 = sphi 0, %s87
    %s91 = sphi 0, %s90
    %s107 = sphi 0, %s91
  $region4: #{policy_forward.1} parent=0 // loop_header_branch
    %12 = sbr.rel (%p10) target = $region8
  $region5: #{policy_forward.1} parent=0 // loop_body
    %s14 = ssub.s32 %s9, 1
    %s15 = ssub.s32 %s9, 2
    %s16 = sadd.s32 %s9, 1
    %s17 = ssub.s32 %s9, %s16
    %p18 = scmp.eq.s32.totalorder %s17, 0
    %s20 = sadd.s32 %s19, 1
    %s21 = scalar_select %p18, %s19, %s20
    %p24 = pneg %p18
    %p25 = scmp.eq.s32.totalorder %s9, 1
    %p26 = por %p24, %p25
    %p27 = scmp.ne.s32.totalorder %s19, %s22
    %p28 = scmp.eq.s32.totalorder %s9, 0
    %p29 = por %p27, %p28
    %p30 = scmp.ne.s32.totalorder %s19, %s22
    %p31 = scmp.eq.s32.totalorder %s14, 1
    %p32 = por %p30, %p31
    %p33 = scmp.ne.s32.totalorder %s22, %s23
    %p34 = scmp.eq.s32.totalorder %s14, 0
    %p35 = por %p33, %p34
    %p36 = scmp.ne.s32.totalorder %s22, %s23
    %p37 = scmp.eq.s32.totalorder %s15, 1
    %p38 = por %p36, %p37
    %p40 = scmp.ne.s32.totalorder %s23, %s39
    %p41 = scmp.eq.s32.totalorder %s15, 0
    %p42 = por %p40, %p41
    %s44 = sadd.s32 %s43, 1
    %p47 = scmp.eq.s32.totalorder %s9, 1
    %p48 = scmp.ne.s32.totalorder %s43, %s45
    %p49 = scmp.eq.s32.totalorder %s9, 0
    %p50 = por %p48, %p49
    %p51 = scmp.ne.s32.totalorder %s43, %s45
    %p52 = scmp.eq.s32.totalorder %s14, 1
    %p53 = por %p51, %p52
    %p54 = scmp.ne.s32.totalorder %s45, %s46
    %p55 = scmp.eq.s32.totalorder %s14, 0
    %p56 = por %p54, %p55
    %p57 = scmp.ne.s32.totalorder %s45, %s46
    %p58 = scmp.eq.s32.totalorder %s15, 1
    %p59 = por %p57, %p58
    %p61 = scmp.ne.s32.totalorder %s46, %s60
    %p62 = scmp.eq.s32.totalorder %s15, 0
    %p63 = por %p61, %p62
    %s65 = sadd.s32 %s64, 1
    %p68 = scmp.eq.s32.totalorder %s9, 1
    %p69 = scmp.ne.s32.totalorder %s64, %s66
    %p70 = scmp.eq.s32.totalorder %s9, 0
    %p71 = por %p69, %p70
    %p72 = scmp.ne.s32.totalorder %s64, %s66
    %p73 = scmp.eq.s32.totalorder %s14, 1
    %p74 = por %p72, %p73
    %p75 = scmp.ne.s32.totalorder %s66, %s67
    %p76 = scmp.eq.s32.totalorder %s14, 0
    %p77 = por %p75, %p76
    %p78 = scmp.ne.s32.totalorder %s66, %s67
    %p79 = scmp.eq.s32.totalorder %s15, 1
    %p80 = por %p78, %p79
    %p82 = scmp.ne.s32.totalorder %s67, %s81
    %p83 = scmp.eq.s32.totalorder %s15, 0
    %p84 = por %p82, %p83
    %s85 = ssub.s32 %s9, %s16
    %p86 = scmp.eq.s32.totalorder %s85, 0
    %s88 = sadd.s32 %s87, 1
    %s89 = scalar_select %p86, %s87, %s88
    %p92 = pneg %p86
    %p93 = scmp.eq.s32.totalorder %s9, 1
    %p94 = por %p92, %p93
    %p95 = scmp.ne.s32.totalorder %s87, %s90
    %p96 = scmp.eq.s32.totalorder %s9, 0
    %p97 = por %p95, %p96
    %p98 = scmp.ne.s32.totalorder %s87, %s90
    %p99 = scmp.eq.s32.totalorder %s14, 1
    %p100 = por %p98, %p99
    %p101 = scmp.ne.s32.totalorder %s90, %s91
    %p102 = scmp.eq.s32.totalorder %s14, 0
    %p103 = por %p101, %p102
    %p104 = scmp.ne.s32.totalorder %s90, %s91
    %p105 = scmp.eq.s32.totalorder %s15, 1
    %p106 = por %p104, %p105
    %p108 = scmp.ne.s32.totalorder %s91, %s107
    %p109 = scmp.eq.s32.totalorder %s15, 0
    %p110 = por %p108, %p109
    %p111 = scmp.le.s32.totalorder 1, %s9
    %p112 = scmp.lt.s32.totalorder %s9, 3
    %p113 = pnand %p111, %p112
    %p114 = pneg %p113
    // Predicated region
    $region9: #{policy_forward.1} parent=5 // pred_check
      _
    $region10: #{policy_forward.1} parent=5 // pred_check_branch
      %116 = sbr.rel (%p113) target = $region12
    $region11: #{policy_forward.1} parent=5 // pred_region
      %s117 = ssub.s32 %s9, 1
      // Predicated region
      $region13: #{policy_forward.1} parent=11 // pred_check
        %p118 = pneg %p56
      $region14: #{policy_forward.1} parent=11 // pred_check_branch
        %120 = sbr.rel (%p118) target = $region16
      $region15: #{policy_forward.1} parent=11 // pred_region
        _
      $region16: #{policy_forward.1} parent=11 // pred_fallthru
        _
      // Predicated region
      $region17: #{policy_forward.1} parent=11 // pred_check
        %p121 = pneg %p77
      $region18: #{policy_forward.1} parent=11 // pred_check_branch
        %123 = sbr.rel (%p121) target = $region20
      $region19: #{policy_forward.1} parent=11 // pred_region
        _
      $region20: #{policy_forward.1} parent=11 // pred_fallthru
        _
    $region12: #{policy_forward.1} parent=5 // pred_fallthru
      _
    %p124 = scmp.lt.s32.totalorder %s9, 2
    // Predicated region
    $region21: #{policy_forward.1} parent=5 // pred_check
      %p125 = pneg %p124
    $region22: #{policy_forward.1} parent=5 // pred_check_branch
      %127 = sbr.rel (%p125) target = $region24
    $region23: #{policy_forward.1} parent=5 // pred_region
      // Predicated region
      $region25: #{policy_forward.1} parent=23 // pred_check
        %p128 = pneg %p29
      $region26: #{policy_forward.1} parent=23 // pred_check_branch
        %130 = sbr.rel (%p128) target = $region28
      $region27: #{policy_forward.1} parent=23 // pred_region
        %s131 = smul.u32 16, %s9
        %p132 = scmp.lt.s32.totalorder %s131, 31
        %s133 = scalar_select %p132, %s131, 31
        %s134 = smul.addr %s133, 8
        %s135 = scalar_lea.vmem %s0, %s134
        %s136 = smul.u32 16, %s9
      $region28: #{policy_forward.1} parent=23 // pred_fallthru
        _
    $region24: #{policy_forward.1} parent=5 // pred_fallthru
      _
    %p137 = scmp.le.s32.totalorder 1, %s9
    %p138 = scmp.lt.s32.totalorder %s9, 3
    %p139 = pnand %p137, %p138
    %p140 = pneg %p139
    // Predicated region
    $region29: #{policy_forward.1} parent=5 // pred_check
      _
    $region30: #{policy_forward.1} parent=5 // pred_check_branch
      %142 = sbr.rel (%p139) target = $region32
    $region31: #{policy_forward.1} parent=5 // pred_region
      %s143 = ssub.s32 %s9, 1
      %s144 = smul.u32 16, %s14
      %p145 = scmp.lt.s32.totalorder %s144, 31
      %s146 = scalar_select %p145, %s144, 31
      %s147 = smul.addr %s146, 8
      %s148 = scalar_lea.vmem %s0, %s147
      %p149 = pneg %p35
      %p150 = pneg %p32
      %p151 = pneg %p56
      %p152 = pneg %p53
      %p153 = pneg %p77
      %p154 = pneg %p74
      %p155 = pneg %p103
      %p156 = pneg %p100
      %s157 = smul.u32 16, %s14
      %p158 = scmp.lt.s32.totalorder %s157, 31
      %s159 = scalar_select %p158, %s157, 31
      %s160 = smul.addr %s159, 8
      %s161 = scalar_lea.vmem %s3, %s160
      %s162 = smul.u32 16, %s14
      %p163 = scmp.lt.s32.totalorder %s162, 31
      %s164 = scalar_select %p163, %s162, 31
      %s165 = smul.addr %s164, 8
      %s166 = scalar_lea.vmem %s0, %s165
      %s167 = smul.u32 16, %s14
      %s168 = smul.u32 16, %s14
      %p169 = scmp.lt.s32.totalorder %s168, 31
      %s170 = scalar_select %p169, %s168, 31
      %s171 = smul.addr %s170, 8
      %s172 = scalar_lea.vmem %s3, %s171
      %s173 = smul.u32 16, %s14
      %v174 = vld [vmem:[%s166] sm:$0xff]
      %v175 = vld [vmem:[%s166 + $0x8] sm:$0xff]
      %v176 = vld [vmem:[%s166 + $0x10] sm:$0xff]
      %v177 = vld [vmem:[%s166 + $0x18] sm:$0xff]
      %v178 = vld [vmem:[%s166 + $0x20] sm:$0xff]
      %v179 = vld [vmem:[%s166 + $0x28] sm:$0xff]
      %v180 = vld [vmem:[%s166 + $0x30] sm:$0xff]
      %v181 = vld [vmem:[%s166 + $0x38] sm:$0xff]
      %v182 = vld [vmem:[%s166 + $0x40] sm:$0xff]
      %v183 = vld [vmem:[%s166 + $0x48] sm:$0xff]
      %v184 = vld [vmem:[%s166 + $0x50] sm:$0xff]
      %v185 = vld [vmem:[%s166 + $0x58] sm:$0xff]
      %v186 = vld [vmem:[%s166 + $0x60] sm:$0xff]
      %v187 = vld [vmem:[%s166 + $0x68] sm:$0xff]
      %v188 = vld [vmem:[%s166 + $0x70] sm:$0xff]
      %v189 = vld [vmem:[%s166 + $0x78] sm:$0xff]
      %v190 = vpack.c.bf16 %v175, %v174
      %v191 = vpack.c.bf16 %v177, %v176
      %v192 = vpack.c.bf16 %v179, %v178
      %v193 = vpack.c.bf16 %v181, %v180
      %v194 = vpack.c.bf16 %v183, %v182
      %v195 = vpack.c.bf16 %v185, %v184
      %v196 = vpack.c.bf16 %v187, %v186
      %v197 = vpack.c.bf16 %v189, %v188
      %v198 = vld [vmem:[%s1] sm:$0xf]
      %v199 = vld [vmem:[%s1 + $0x4] sm:$0xf]
      %v200 = vld [vmem:[%s1 + $0x8] sm:$0xf]
      %v201 = vld [vmem:[%s1 + $0xc] sm:$0xf]
      %v202 = vld [vmem:[%s1 + $0x10] sm:$0xf]
      %v203 = vld [vmem:[%s1 + $0x14] sm:$0xf]
      %v204 = vld [vmem:[%s1 + $0x18] sm:$0xf]
      %v205 = vld [vmem:[%s1 + $0x1c] sm:$0xf]
      %v206 = vld [vmem:[%s1 + $0x20] sm:$0xf]
      %v207 = vld [vmem:[%s1 + $0x24] sm:$0xf]
      %v208 = vld [vmem:[%s1 + $0x28] sm:$0xf]
      %v209 = vld [vmem:[%s1 + $0x2c] sm:$0xf]
      %v210 = vld [vmem:[%s1 + $0x30] sm:$0xf]
      %v211 = vld [vmem:[%s1 + $0x34] sm:$0xf]
      %v212 = vld [vmem:[%s1 + $0x38] sm:$0xf]
      %v213 = vld [vmem:[%s1 + $0x3c] sm:$0xf]
      %v214 = vld [vmem:[%s2] sm:$0x1]
      %v216 = vperm.slane %v214, 0
      %v234 = vunpack.c.l.b16 %v198
      %v235 = vunpack.c.l.b16 %v199
      %v236 = vunpack.c.l.b16 %v200
      %v237 = vunpack.c.l.b16 %v201
      %v238 = vunpack.c.l.b16 %v202
      %v239 = vunpack.c.l.b16 %v203
      %v240 = vunpack.c.l.b16 %v204
      %v241 = vunpack.c.l.b16 %v205
      %v242 = vunpack.c.l.b16 %v206
      %v243 = vunpack.c.l.b16 %v207
      %v244 = vunpack.c.l.b16 %v208
      %v245 = vunpack.c.l.b16 %v209
      %v246 = vunpack.c.l.b16 %v210
      %v247 = vunpack.c.l.b16 %v211
      %v248 = vunpack.c.l.b16 %v212
      %v249 = vunpack.c.l.b16 %v213
      %v250 = vpack.c.b16 %v235, %v234
      %v251 = vpack.c.b16 %v237, %v236
      %v252 = vpack.c.b16 %v239, %v238
      %v253 = vpack.c.b16 %v241, %v240
      %v254 = vpack.c.b16 %v243, %v242
      %v255 = vpack.c.b16 %v245, %v244
      %v256 = vpack.c.b16 %v247, %v246
      %v257 = vpack.c.b16 %v249, %v248
      %266 = vmatpush.bf16.msra.mxu0 %v257
      %267 = vmatpush.bf16.msra.mxu0 %v256
      %268 = vmatpush.bf16.msra.mxu0 %v255
      %269 = vmatpush.bf16.msra.mxu0 %v254
      %270 = vmatpush.bf16.msra.mxu0 %v253
      %271 = vmatpush.bf16.msra.mxu0 %v252
      %272 = vmatpush.bf16.msra.mxu0 %v251
      %273 = vmatpush.bf16.msra.mxu0 %v250
      %274 = vmatmul.bf16.gmra.mxu0 %v190
      %v275 = vpop.f32.mrf.mxu0
      %v276 = vadd.f32 %v216, %v275
      %v277 = vpop.f32.mrf.mxu0
      %v278 = vadd.f32 %v216, %v277
      %279 = vmatmul.bf16.gmra.mxu0 %v191
      %v280 = vpop.f32.mrf.mxu0
      %v281 = vadd.f32 %v216, %v280
      %v282 = vpop.f32.mrf.mxu0
      %v283 = vadd.f32 %v216, %v282
      %284 = vmatmul.bf16.gmra.mxu0 %v192
      %v285 = vpop.f32.mrf.mxu0
      %v286 = vadd.f32 %v216, %v285
      %v287 = vpop.f32.mrf.mxu0
      %v288 = vadd.f32 %v216, %v287
      %289 = vmatmul.bf16.gmra.mxu0 %v193
      %v290 = vpop.f32.mrf.mxu0
      %v291 = vadd.f32 %v216, %v290
      %v292 = vpop.f32.mrf.mxu0
      %v293 = vadd.f32 %v216, %v292
      %294 = vmatmul.bf16.gmra.mxu0 %v194
      %v295 = vpop.f32.mrf.mxu0
      %v296 = vadd.f32 %v216, %v295
      %v297 = vpop.f32.mrf.mxu0
      %v298 = vadd.f32 %v216, %v297
      %299 = vmatmul.bf16.gmra.mxu0 %v195
      %v300 = vpop.f32.mrf.mxu0
      %v301 = vadd.f32 %v216, %v300
      %v302 = vpop.f32.mrf.mxu0
      %v303 = vadd.f32 %v216, %v302
      %304 = vmatmul.bf16.gmra.mxu0 %v196
      %v305 = vpop.f32.mrf.mxu0
      %v306 = vadd.f32 %v216, %v305
      %v307 = vpop.f32.mrf.mxu0
      %v308 = vadd.f32 %v216, %v307
      %309 = vmatmul.bf16.gmra.mxu0 %v197
      %v310 = vpop.f32.mrf.mxu0
      %v311 = vadd.f32 %v216, %v310
      %v312 = vpop.f32.mrf.mxu0
      %v313 = vadd.f32 %v216, %v312
      %314 = vdwg.mxu0
      %v315 = vmax.f32 %v276, 0.0
      %v316 = vmax.f32 %v278, 0.0
      %v317 = vmax.f32 %v281, 0.0
      %v318 = vmax.f32 %v283, 0.0
      %v319 = vmax.f32 %v286, 0.0
      %v320 = vmax.f32 %v288, 0.0
      %v321 = vmax.f32 %v291, 0.0
      %v322 = vmax.f32 %v293, 0.0
      %v323 = vmax.f32 %v296, 0.0
      %v324 = vmax.f32 %v298, 0.0
      %v325 = vmax.f32 %v301, 0.0
      %v326 = vmax.f32 %v303, 0.0
      %v327 = vmax.f32 %v306, 0.0
      %v328 = vmax.f32 %v308, 0.0
      %v329 = vmax.f32 %v311, 0.0
      %v330 = vmax.f32 %v313, 0.0
      %v331 = vpack.c.bf16 %v316, %v315
      %v332 = vpack.c.bf16 %v318, %v317
      %v333 = vpack.c.bf16 %v320, %v319
      %v334 = vpack.c.bf16 %v322, %v321
      %v335 = vpack.c.bf16 %v324, %v323
      %v336 = vpack.c.bf16 %v326, %v325
      %v337 = vpack.c.bf16 %v328, %v327
      %v338 = vpack.c.bf16 %v330, %v329
      %s339 = scalar_lea.vmem %s1, 64
      %v340 = vld [vmem:[%s339] sm:$0xf]
      %v341 = vld [vmem:[%s339 + $0x4] sm:$0xf]
      %v342 = vld [vmem:[%s339 + $0x8] sm:$0xf]
      %v343 = vld [vmem:[%s339 + $0xc] sm:$0xf]
      %v344 = vld [vmem:[%s339 + $0x10] sm:$0xf]
      %v345 = vld [vmem:[%s339 + $0x14] sm:$0xf]
      %v346 = vld [vmem:[%s339 + $0x18] sm:$0xf]
      %v347 = vld [vmem:[%s339 + $0x1c] sm:$0xf]
      %v348 = vld [vmem:[%s339 + $0x20] sm:$0xf]
      %v349 = vld [vmem:[%s339 + $0x24] sm:$0xf]
      %v350 = vld [vmem:[%s339 + $0x28] sm:$0xf]
      %v351 = vld [vmem:[%s339 + $0x2c] sm:$0xf]
      %v352 = vld [vmem:[%s339 + $0x30] sm:$0xf]
      %v353 = vld [vmem:[%s339 + $0x34] sm:$0xf]
      %v354 = vld [vmem:[%s339 + $0x38] sm:$0xf]
      %v355 = vld [vmem:[%s339 + $0x3c] sm:$0xf]
      %s356 = scalar_lea.vmem %s2, 1
      %v357 = vld [vmem:[%s356] sm:$0x1]
      %v359 = vperm.slane %v357, 0
      %v377 = vunpack.c.l.b16 %v340
      %v378 = vunpack.c.l.b16 %v341
      %v379 = vunpack.c.l.b16 %v342
      %v380 = vunpack.c.l.b16 %v343
      %v381 = vunpack.c.l.b16 %v344
      %v382 = vunpack.c.l.b16 %v345
      %v383 = vunpack.c.l.b16 %v346
      %v384 = vunpack.c.l.b16 %v347
      %v385 = vunpack.c.l.b16 %v348
      %v386 = vunpack.c.l.b16 %v349
      %v387 = vunpack.c.l.b16 %v350
      %v388 = vunpack.c.l.b16 %v351
      %v389 = vunpack.c.l.b16 %v352
      %v390 = vunpack.c.l.b16 %v353
      %v391 = vunpack.c.l.b16 %v354
      %v392 = vunpack.c.l.b16 %v355
      %v393 = vpack.c.b16 %v378, %v377
      %v394 = vpack.c.b16 %v380, %v379
      %v395 = vpack.c.b16 %v382, %v381
      %v396 = vpack.c.b16 %v384, %v383
      %v397 = vpack.c.b16 %v386, %v385
      %v398 = vpack.c.b16 %v388, %v387
      %v399 = vpack.c.b16 %v390, %v389
      %v400 = vpack.c.b16 %v392, %v391
      %409 = vmatpush.bf16.msra.mxu0 %v400
      %410 = vmatpush.bf16.msra.mxu0 %v399
      %411 = vmatpush.bf16.msra.mxu0 %v398
      %412 = vmatpush.bf16.msra.mxu0 %v397
      %413 = vmatpush.bf16.msra.mxu0 %v396
      %414 = vmatpush.bf16.msra.mxu0 %v395
      %415 = vmatpush.bf16.msra.mxu0 %v394
      %416 = vmatpush.bf16.msra.mxu0 %v393
      %417 = vmatmul.bf16.gmra.mxu0 %v331
      %v418 = vpop.f32.mrf.mxu0
      %v419 = vadd.f32 %v359, %v418
      %v420 = vpop.f32.mrf.mxu0
      %v421 = vadd.f32 %v359, %v420
      %422 = vmatmul.bf16.gmra.mxu0 %v332
      %v423 = vpop.f32.mrf.mxu0
      %v424 = vadd.f32 %v359, %v423
      %v425 = vpop.f32.mrf.mxu0
      %v426 = vadd.f32 %v359, %v425
      %427 = vmatmul.bf16.gmra.mxu0 %v333
      %v428 = vpop.f32.mrf.mxu0
      %v429 = vadd.f32 %v359, %v428
      %v430 = vpop.f32.mrf.mxu0
      %v431 = vadd.f32 %v359, %v430
      %432 = vmatmul.bf16.gmra.mxu0 %v334
      %v433 = vpop.f32.mrf.mxu0
      %v434 = vadd.f32 %v359, %v433
      %v435 = vpop.f32.mrf.mxu0
      %v436 = vadd.f32 %v359, %v435
      %437 = vmatmul.bf16.gmra.mxu0 %v335
      %v438 = vpop.f32.mrf.mxu0
      %v439 = vadd.f32 %v359, %v438
      %v440 = vpop.f32.mrf.mxu0
      %v441 = vadd.f32 %v359, %v440
      %442 = vmatmul.bf16.gmra.mxu0 %v336
      %v443 = vpop.f32.mrf.mxu0
      %v444 = vadd.f32 %v359, %v443
      %v445 = vpop.f32.mrf.mxu0
      %v446 = vadd.f32 %v359, %v445
      %447 = vmatmul.bf16.gmra.mxu0 %v337
      %v448 = vpop.f32.mrf.mxu0
      %v449 = vadd.f32 %v359, %v448
      %v450 = vpop.f32.mrf.mxu0
      %v451 = vadd.f32 %v359, %v450
      %452 = vmatmul.bf16.gmra.mxu0 %v338
      %v453 = vpop.f32.mrf.mxu0
      %v454 = vadd.f32 %v359, %v453
      %v455 = vpop.f32.mrf.mxu0
      %v456 = vadd.f32 %v359, %v455
      %457 = vdwg.mxu0
      %v458 = vmax.f32 %v419, 0.0
      %v459 = vmax.f32 %v421, 0.0
      %v460 = vmax.f32 %v424, 0.0
      %v461 = vmax.f32 %v426, 0.0
      %v462 = vmax.f32 %v429, 0.0
      %v463 = vmax.f32 %v431, 0.0
      %v464 = vmax.f32 %v434, 0.0
      %v465 = vmax.f32 %v436, 0.0
      %v466 = vmax.f32 %v439, 0.0
      %v467 = vmax.f32 %v441, 0.0
      %v468 = vmax.f32 %v444, 0.0
      %v469 = vmax.f32 %v446, 0.0
      %v470 = vmax.f32 %v449, 0.0
      %v471 = vmax.f32 %v451, 0.0
      %v472 = vmax.f32 %v454, 0.0
      %v473 = vmax.f32 %v456, 0.0
      %v474 = vpack.c.bf16 %v459, %v458
      %v475 = vpack.c.bf16 %v461, %v460
      %v476 = vpack.c.bf16 %v463, %v462
      %v477 = vpack.c.bf16 %v465, %v464
      %v478 = vpack.c.bf16 %v467, %v466
      %v479 = vpack.c.bf16 %v469, %v468
      %v480 = vpack.c.bf16 %v471, %v470
      %v481 = vpack.c.bf16 %v473, %v472
      %s482 = scalar_lea.vmem %s1, 128
      %v483 = vld [vmem:[%s482] sm:$0xf]
      %v484 = vld [vmem:[%s482 + $0x4] sm:$0xf]
      %v485 = vld [vmem:[%s482 + $0x8] sm:$0xf]
      %v486 = vld [vmem:[%s482 + $0xc] sm:$0xf]
      %v487 = vld [vmem:[%s482 + $0x10] sm:$0xf]
      %v488 = vld [vmem:[%s482 + $0x14] sm:$0xf]
      %v489 = vld [vmem:[%s482 + $0x18] sm:$0xf]
      %v490 = vld [vmem:[%s482 + $0x1c] sm:$0xf]
      %v491 = vld [vmem:[%s482 + $0x20] sm:$0xf]
      %v492 = vld [vmem:[%s482 + $0x24] sm:$0xf]
      %v493 = vld [vmem:[%s482 + $0x28] sm:$0xf]
      %v494 = vld [vmem:[%s482 + $0x2c] sm:$0xf]
      %v495 = vld [vmem:[%s482 + $0x30] sm:$0xf]
      %v496 = vld [vmem:[%s482 + $0x34] sm:$0xf]
      %v497 = vld [vmem:[%s482 + $0x38] sm:$0xf]
      %v498 = vld [vmem:[%s482 + $0x3c] sm:$0xf]
      %s499 = scalar_lea.vmem %s2, 2
      %v500 = vld [vmem:[%s499] sm:$0x1]
      %v502 = vperm.slane %v500, 0
      %v520 = vunpack.c.l.b16 %v483
      %v521 = vunpack.c.l.b16 %v484
      %v522 = vunpack.c.l.b16 %v485
      %v523 = vunpack.c.l.b16 %v486
      %v524 = vunpack.c.l.b16 %v487
      %v525 = vunpack.c.l.b16 %v488
      %v526 = vunpack.c.l.b16 %v489
      %v527 = vunpack.c.l.b16 %v490
      %v528 = vunpack.c.l.b16 %v491
      %v529 = vunpack.c.l.b16 %v492
      %v530 = vunpack.c.l.b16 %v493
      %v531 = vunpack.c.l.b16 %v494
      %v532 = vunpack.c.l.b16 %v495
      %v533 = vunpack.c.l.b16 %v496
      %v534 = vunpack.c.l.b16 %v497
      %v535 = vunpack.c.l.b16 %v498
      %v536 = vpack.c.b16 %v521, %v520
      %v537 = vpack.c.b16 %v523, %v522
      %v538 = vpack.c.b16 %v525, %v524
      %v539 = vpack.c.b16 %v527, %v526
      %v540 = vpack.c.b16 %v529, %v528
      %v541 = vpack.c.b16 %v531, %v530
      %v542 = vpack.c.b16 %v533, %v532
      %v543 = vpack.c.b16 %v535, %v534
      %552 = vmatpush.bf16.msra.mxu0 %v543
      %553 = vmatpush.bf16.msra.mxu0 %v542
      %554 = vmatpush.bf16.msra.mxu0 %v541
      %555 = vmatpush.bf16.msra.mxu0 %v540
      %556 = vmatpush.bf16.msra.mxu0 %v539
      %557 = vmatpush.bf16.msra.mxu0 %v538
      %558 = vmatpush.bf16.msra.mxu0 %v537
      %559 = vmatpush.bf16.msra.mxu0 %v536
      %560 = vmatmul.bf16.gmra.mxu0 %v474
      %v561 = vpop.f32.mrf.mxu0
      %v562 = vadd.f32 %v502, %v561
      %v563 = vpop.f32.mrf.mxu0
      %v564 = vadd.f32 %v502, %v563
      %565 = vmatmul.bf16.gmra.mxu0 %v475
      %v566 = vpop.f32.mrf.mxu0
      %v567 = vadd.f32 %v502, %v566
      %v568 = vpop.f32.mrf.mxu0
      %v569 = vadd.f32 %v502, %v568
      %570 = vmatmul.bf16.gmra.mxu0 %v476
      %v571 = vpop.f32.mrf.mxu0
      %v572 = vadd.f32 %v502, %v571
      %v573 = vpop.f32.mrf.mxu0
      %v574 = vadd.f32 %v502, %v573
      %575 = vmatmul.bf16.gmra.mxu0 %v477
      %v576 = vpop.f32.mrf.mxu0
      %v577 = vadd.f32 %v502, %v576
      %v578 = vpop.f32.mrf.mxu0
      %v579 = vadd.f32 %v502, %v578
      %580 = vmatmul.bf16.gmra.mxu0 %v478
      %v581 = vpop.f32.mrf.mxu0
      %v582 = vadd.f32 %v502, %v581
      %v583 = vpop.f32.mrf.mxu0
      %v584 = vadd.f32 %v502, %v583
      %585 = vmatmul.bf16.gmra.mxu0 %v479
      %v586 = vpop.f32.mrf.mxu0
      %v587 = vadd.f32 %v502, %v586
      %v588 = vpop.f32.mrf.mxu0
      %v589 = vadd.f32 %v502, %v588
      %590 = vmatmul.bf16.gmra.mxu0 %v480
      %v591 = vpop.f32.mrf.mxu0
      %v592 = vadd.f32 %v502, %v591
      %v593 = vpop.f32.mrf.mxu0
      %v594 = vadd.f32 %v502, %v593
      %595 = vmatmul.bf16.gmra.mxu0 %v481
      %v596 = vpop.f32.mrf.mxu0
      %v597 = vadd.f32 %v502, %v596
      %v598 = vpop.f32.mrf.mxu0
      %v599 = vadd.f32 %v502, %v598
      %600 = vdwg.mxu0
      %v601 = vlaneseq
      %v602 = vand.u32 %v601, 127
      %vm603 = vcmp.lt.s32.totalorder %v602, 4
      %v604 = vsel %vm603, %v562, -1e+30
      %v605 = vsel %vm603, %v564, -1e+30
      %v606 = vsel %vm603, %v567, -1e+30
      %v607 = vsel %vm603, %v569, -1e+30
      %v608 = vsel %vm603, %v572, -1e+30
      %v609 = vsel %vm603, %v574, -1e+30
      %v610 = vsel %vm603, %v577, -1e+30
      %v611 = vsel %vm603, %v579, -1e+30
      %v612 = vsel %vm603, %v582, -1e+30
      %v613 = vsel %vm603, %v584, -1e+30
      %v614 = vsel %vm603, %v587, -1e+30
      %v615 = vsel %vm603, %v589, -1e+30
      %v616 = vsel %vm603, %v592, -1e+30
      %v617 = vsel %vm603, %v594, -1e+30
      %v618 = vsel %vm603, %v597, -1e+30
      %v619 = vsel %vm603, %v599, -1e+30
      %620 = vmax.xlane.f32.xlu0 %v604
      %v621 = vpop.xlane.xlu0 %620
      %622 = vmax.xlane.f32.xlu0 %v605
      %v623 = vpop.xlane.xlu0 %622
      %624 = vmax.xlane.f32.xlu0 %v606
      %v625 = vpop.xlane.xlu0 %624
      %626 = vmax.xlane.f32.xlu0 %v607
      %v627 = vpop.xlane.xlu0 %626
      %628 = vmax.xlane.f32.xlu0 %v608
      %v629 = vpop.xlane.xlu0 %628
      %630 = vmax.xlane.f32.xlu0 %v609
      %v631 = vpop.xlane.xlu0 %630
      %632 = vmax.xlane.f32.xlu0 %v610
      %v633 = vpop.xlane.xlu0 %632
      %634 = vmax.xlane.f32.xlu0 %v611
      %v635 = vpop.xlane.xlu0 %634
      %636 = vmax.xlane.f32.xlu0 %v612
      %v637 = vpop.xlane.xlu0 %636
      %638 = vmax.xlane.f32.xlu0 %v613
      %v639 = vpop.xlane.xlu0 %638
      %640 = vmax.xlane.f32.xlu0 %v614
      %v641 = vpop.xlane.xlu0 %640
      %642 = vmax.xlane.f32.xlu0 %v615
      %v643 = vpop.xlane.xlu0 %642
      %644 = vmax.xlane.f32.xlu0 %v616
      %v645 = vpop.xlane.xlu0 %644
      %646 = vmax.xlane.f32.xlu0 %v617
      %v647 = vpop.xlane.xlu0 %646
      %648 = vmax.xlane.f32.xlu0 %v618
      %v649 = vpop.xlane.xlu0 %648
      %650 = vmax.xlane.f32.xlu0 %v619
      %v651 = vpop.xlane.xlu0 %650
      %v652 = vsub.f32 %v604, %v621
      %v653 = vsub.f32 %v605, %v623
      %v654 = vsub.f32 %v606, %v625
      %v655 = vsub.f32 %v607, %v627
      %v656 = vsub.f32 %v608, %v629
      %v657 = vsub.f32 %v609, %v631
      %v658 = vsub.f32 %v610, %v633
      %v659 = vsub.f32 %v611, %v635
      %v660 = vsub.f32 %v612, %v637
      %v661 = vsub.f32 %v613, %v639
      %v662 = vsub.f32 %v614, %v641
      %v663 = vsub.f32 %v615, %v643
      %v664 = vsub.f32 %v616, %v645
      %v665 = vsub.f32 %v617, %v647
      %v666 = vsub.f32 %v618, %v649
      %v667 = vsub.f32 %v619, %v651
      %v668 = vmul.f32 %v652, 1.442695
      %v669 = vpow.pop %v668
      %v670 = vmul.f32 %v653, 1.442695
      %v671 = vpow.pop %v670
      %v672 = vmul.f32 %v654, 1.442695
      %v673 = vpow.pop %v672
      %v674 = vmul.f32 %v655, 1.442695
      %v675 = vpow.pop %v674
      %v676 = vmul.f32 %v656, 1.442695
      %v677 = vpow.pop %v676
      %v678 = vmul.f32 %v657, 1.442695
      %v679 = vpow.pop %v678
      %v680 = vmul.f32 %v658, 1.442695
      %v681 = vpow.pop %v680
      %v682 = vmul.f32 %v659, 1.442695
      %v683 = vpow.pop %v682
      %v684 = vmul.f32 %v660, 1.442695
      %v685 = vpow.pop %v684
      %v686 = vmul.f32 %v661, 1.442695
      %v687 = vpow.pop %v686
      %v688 = vmul.f32 %v662, 1.442695
      %v689 = vpow.pop %v688
      %v690 = vmul.f32 %v663, 1.442695
      %v691 = vpow.pop %v690
      %v692 = vmul.f32 %v664, 1.442695
      %v693 = vpow.pop %v692
      %v694 = vmul.f32 %v665, 1.442695
      %v695 = vpow.pop %v694
      %v696 = vmul.f32 %v666, 1.442695
      %v697 = vpow.pop %v696
      %v698 = vmul.f32 %v667, 1.442695
      %v699 = vpow.pop %v698
      %700 = vadd.xlane.f32.xlu0 %v669
      %v701 = vpop.xlane.xlu0 %700
      %702 = vadd.xlane.f32.xlu0 %v671
      %v703 = vpop.xlane.xlu0 %702
      %704 = vadd.xlane.f32.xlu0 %v673
      %v705 = vpop.xlane.xlu0 %704
      %706 = vadd.xlane.f32.xlu0 %v675
      %v707 = vpop.xlane.xlu0 %706
      %708 = vadd.xlane.f32.xlu0 %v677
      %v709 = vpop.xlane.xlu0 %708
      %710 = vadd.xlane.f32.xlu0 %v679
      %v711 = vpop.xlane.xlu0 %710
      %712 = vadd.xlane.f32.xlu0 %v681
      %v713 = vpop.xlane.xlu0 %712
      %714 = vadd.xlane.f32.xlu0 %v683
      %v715 = vpop.xlane.xlu0 %714
      %716 = vadd.xlane.f32.xlu0 %v685
      %v717 = vpop.xlane.xlu0 %716
      %718 = vadd.xlane.f32.xlu0 %v687
      %v719 = vpop.xlane.xlu0 %718
      %720 = vadd.xlane.f32.xlu0 %v689
      %v721 = vpop.xlane.xlu0 %720
      %722 = vadd.xlane.f32.xlu0 %v691
      %v723 = vpop.xlane.xlu0 %722
      %724 = vadd.xlane.f32.xlu0 %v693
      %v725 = vpop.xlane.xlu0 %724
      %726 = vadd.xlane.f32.xlu0 %v695
      %v727 = vpop.xlane.xlu0 %726
      %728 = vadd.xlane.f32.xlu0 %v697
      %v729 = vpop.xlane.xlu0 %728
      %730 = vadd.xlane.f32.xlu0 %v699
      %v731 = vpop.xlane.xlu0 %730
      %v732 = vrcp.pop %v701
      %v733 = vmul.f32 %v701, %v732
      %v734 = vsub.f32 1.0, %v733
      %v735 = vmul.f32 %v732, %v734
      %v736 = vadd.f32 %v732, %v735
      %vm737 = vweird.f32 %v701
      %vm738 = vweird.f32 %v732
      %vm739 = vmor %vm737, %vm738
      %v740 = vsel %vm739, %v732, %v736
      %v741 = vand.u32 2147483647, %v701
      %vm742 = vcmp.eq.f32.partialorder %v741, 8.507059e+37
      %v743 = vand.u32 %v701, 2147483648
      %v744 = vor.u32 1.1754944e-38, %v743
      %v745 = vsel %vm742, %v744, %v740
      %v746 = vmul.f32 %v669, %v745
      %v747 = vrcp.pop %v703
      %v748 = vmul.f32 %v703, %v747
      %v749 = vsub.f32 1.0, %v748
      %v750 = vmul.f32 %v747, %v749
      %v751 = vadd.f32 %v747, %v750
      %vm752 = vweird.f32 %v703
      %vm753 = vweird.f32 %v747
      %vm754 = vmor %vm752, %vm753
      %v755 = vsel %vm754, %v747, %v751
      %v756 = vand.u32 2147483647, %v703
      %vm757 = vcmp.eq.f32.partialorder %v756, 8.507059e+37
      %v758 = vand.u32 %v703, 2147483648
      %v759 = vor.u32 1.1754944e-38, %v758
      %v760 = vsel %vm757, %v759, %v755
      %v761 = vmul.f32 %v671, %v760
      %v762 = vrcp.pop %v705
      %v763 = vmul.f32 %v705, %v762
      %v764 = vsub.f32 1.0, %v763
      %v765 = vmul.f32 %v762, %v764
      %v766 = vadd.f32 %v762, %v765
      %vm767 = vweird.f32 %v705
      %vm768 = vweird.f32 %v762
      %vm769 = vmor %vm767, %vm768
      %v770 = vsel %vm769, %v762, %v766
      %v771 = vand.u32 2147483647, %v705
      %vm772 = vcmp.eq.f32.partialorder %v771, 8.507059e+37
      %v773 = vand.u32 %v705, 2147483648
      %v774 = vor.u32 1.1754944e-38, %v773
      %v775 = vsel %vm772, %v774, %v770
      %v776 = vmul.f32 %v673, %v775
      %v777 = vrcp.pop %v707
      %v778 = vmul.f32 %v707, %v777
      %v779 = vsub.f32 1.0, %v778
      %v780 = vmul.f32 %v777, %v779
      %v781 = vadd.f32 %v777, %v780
      %vm782 = vweird.f32 %v707
      %vm783 = vweird.f32 %v777
      %vm784 = vmor %vm782, %vm783
      %v785 = vsel %vm784, %v777, %v781
      %v786 = vand.u32 2147483647, %v707
      %vm787 = vcmp.eq.f32.partialorder %v786, 8.507059e+37
      %v788 = vand.u32 %v707, 2147483648
      %v789 = vor.u32 1.1754944e-38, %v788
      %v790 = vsel %vm787, %v789, %v785
      %v791 = vmul.f32 %v675, %v790
      %v792 = vrcp.pop %v709
      %v793 = vmul.f32 %v709, %v792
      %v794 = vsub.f32 1.0, %v793
      %v795 = vmul.f32 %v792, %v794
      %v796 = vadd.f32 %v792, %v795
      %vm797 = vweird.f32 %v709
      %vm798 = vweird.f32 %v792
      %vm799 = vmor %vm797, %vm798
      %v800 = vsel %vm799, %v792, %v796
      %v801 = vand.u32 2147483647, %v709
      %vm802 = vcmp.eq.f32.partialorder %v801, 8.507059e+37
      %v803 = vand.u32 %v709, 2147483648
      %v804 = vor.u32 1.1754944e-38, %v803
      %v805 = vsel %vm802, %v804, %v800
      %v806 = vmul.f32 %v677, %v805
      %v807 = vrcp.pop %v711
      %v808 = vmul.f32 %v711, %v807
      %v809 = vsub.f32 1.0, %v808
      %v810 = vmul.f32 %v807, %v809
      %v811 = vadd.f32 %v807, %v810
      %vm812 = vweird.f32 %v711
      %vm813 = vweird.f32 %v807
      %vm814 = vmor %vm812, %vm813
      %v815 = vsel %vm814, %v807, %v811
      %v816 = vand.u32 2147483647, %v711
      %vm817 = vcmp.eq.f32.partialorder %v816, 8.507059e+37
      %v818 = vand.u32 %v711, 2147483648
      %v819 = vor.u32 1.1754944e-38, %v818
      %v820 = vsel %vm817, %v819, %v815
      %v821 = vmul.f32 %v679, %v820
      %v822 = vrcp.pop %v713
      %v823 = vmul.f32 %v713, %v822
      %v824 = vsub.f32 1.0, %v823
      %v825 = vmul.f32 %v822, %v824
      %v826 = vadd.f32 %v822, %v825
      %vm827 = vweird.f32 %v713
      %vm828 = vweird.f32 %v822
      %vm829 = vmor %vm827, %vm828
      %v830 = vsel %vm829, %v822, %v826
      %v831 = vand.u32 2147483647, %v713
      %vm832 = vcmp.eq.f32.partialorder %v831, 8.507059e+37
      %v833 = vand.u32 %v713, 2147483648
      %v834 = vor.u32 1.1754944e-38, %v833
      %v835 = vsel %vm832, %v834, %v830
      %v836 = vmul.f32 %v681, %v835
      %v837 = vrcp.pop %v715
      %v838 = vmul.f32 %v715, %v837
      %v839 = vsub.f32 1.0, %v838
      %v840 = vmul.f32 %v837, %v839
      %v841 = vadd.f32 %v837, %v840
      %vm842 = vweird.f32 %v715
      %vm843 = vweird.f32 %v837
      %vm844 = vmor %vm842, %vm843
      %v845 = vsel %vm844, %v837, %v841
      %v846 = vand.u32 2147483647, %v715
      %vm847 = vcmp.eq.f32.partialorder %v846, 8.507059e+37
      %v848 = vand.u32 %v715, 2147483648
      %v849 = vor.u32 1.1754944e-38, %v848
      %v850 = vsel %vm847, %v849, %v845
      %v851 = vmul.f32 %v683, %v850
      %v852 = vrcp.pop %v717
      %v853 = vmul.f32 %v717, %v852
      %v854 = vsub.f32 1.0, %v853
      %v855 = vmul.f32 %v852, %v854
      %v856 = vadd.f32 %v852, %v855
      %vm857 = vweird.f32 %v717
      %vm858 = vweird.f32 %v852
      %vm859 = vmor %vm857, %vm858
      %v860 = vsel %vm859, %v852, %v856
      %v861 = vand.u32 2147483647, %v717
      %vm862 = vcmp.eq.f32.partialorder %v861, 8.507059e+37
      %v863 = vand.u32 %v717, 2147483648
      %v864 = vor.u32 1.1754944e-38, %v863
      %v865 = vsel %vm862, %v864, %v860
      %v866 = vmul.f32 %v685, %v865
      %v867 = vrcp.pop %v719
      %v868 = vmul.f32 %v719, %v867
      %v869 = vsub.f32 1.0, %v868
      %v870 = vmul.f32 %v867, %v869
      %v871 = vadd.f32 %v867, %v870
      %vm872 = vweird.f32 %v719
      %vm873 = vweird.f32 %v867
      %vm874 = vmor %vm872, %vm873
      %v875 = vsel %vm874, %v867, %v871
      %v876 = vand.u32 2147483647, %v719
      %vm877 = vcmp.eq.f32.partialorder %v876, 8.507059e+37
      %v878 = vand.u32 %v719, 2147483648
      %v879 = vor.u32 1.1754944e-38, %v878
      %v880 = vsel %vm877, %v879, %v875
      %v881 = vmul.f32 %v687, %v880
      %v882 = vrcp.pop %v721
      %v883 = vmul.f32 %v721, %v882
      %v884 = vsub.f32 1.0, %v883
      %v885 = vmul.f32 %v882, %v884
      %v886 = vadd.f32 %v882, %v885
      %vm887 = vweird.f32 %v721
      %vm888 = vweird.f32 %v882
      %vm889 = vmor %vm887, %vm888
      %v890 = vsel %vm889, %v882, %v886
      %v891 = vand.u32 2147483647, %v721
      %vm892 = vcmp.eq.f32.partialorder %v891, 8.507059e+37
      %v893 = vand.u32 %v721, 2147483648
      %v894 = vor.u32 1.1754944e-38, %v893
      %v895 = vsel %vm892, %v894, %v890
      %v896 = vmul.f32 %v689, %v895
      %v897 = vrcp.pop %v723
      %v898 = vmul.f32 %v723, %v897
      %v899 = vsub.f32 1.0, %v898
      %v900 = vmul.f32 %v897, %v899
      %v901 = vadd.f32 %v897, %v900
      %vm902 = vweird.f32 %v723
      %vm903 = vweird.f32 %v897
      %vm904 = vmor %vm902, %vm903
      %v905 = vsel %vm904, %v897, %v901
      %v906 = vand.u32 2147483647, %v723
      %vm907 = vcmp.eq.f32.partialorder %v906, 8.507059e+37
      %v908 = vand.u32 %v723, 2147483648
      %v909 = vor.u32 1.1754944e-38, %v908
      %v910 = vsel %vm907, %v909, %v905
      %v911 = vmul.f32 %v691, %v910
      %v912 = vrcp.pop %v725
      %v913 = vmul.f32 %v725, %v912
      %v914 = vsub.f32 1.0, %v913
      %v915 = vmul.f32 %v912, %v914
      %v916 = vadd.f32 %v912, %v915
      %vm917 = vweird.f32 %v725
      %vm918 = vweird.f32 %v912
      %vm919 = vmor %vm917, %vm918
      %v920 = vsel %vm919, %v912, %v916
      %v921 = vand.u32 2147483647, %v725
      %vm922 = vcmp.eq.f32.partialorder %v921, 8.507059e+37
      %v923 = vand.u32 %v725, 2147483648
      %v924 = vor.u32 1.1754944e-38, %v923
      %v925 = vsel %vm922, %v924, %v920
      %v926 = vmul.f32 %v693, %v925
      %v927 = vrcp.pop %v727
      %v928 = vmul.f32 %v727, %v927
      %v929 = vsub.f32 1.0, %v928
      %v930 = vmul.f32 %v927, %v929
      %v931 = vadd.f32 %v927, %v930
      %vm932 = vweird.f32 %v727
      %vm933 = vweird.f32 %v927
      %vm934 = vmor %vm932, %vm933
      %v935 = vsel %vm934, %v927, %v931
      %v936 = vand.u32 2147483647, %v727
      %vm937 = vcmp.eq.f32.partialorder %v936, 8.507059e+37
      %v938 = vand.u32 %v727, 2147483648
      %v939 = vor.u32 1.1754944e-38, %v938
      %v940 = vsel %vm937, %v939, %v935
      %v941 = vmul.f32 %v695, %v940
      %v942 = vrcp.pop %v729
      %v943 = vmul.f32 %v729, %v942
      %v944 = vsub.f32 1.0, %v943
      %v945 = vmul.f32 %v942, %v944
      %v946 = vadd.f32 %v942, %v945
      %vm947 = vweird.f32 %v729
      %vm948 = vweird.f32 %v942
      %vm949 = vmor %vm947, %vm948
      %v950 = vsel %vm949, %v942, %v946
      %v951 = vand.u32 2147483647, %v729
      %vm952 = vcmp.eq.f32.partialorder %v951, 8.507059e+37
      %v953 = vand.u32 %v729, 2147483648
      %v954 = vor.u32 1.1754944e-38, %v953
      %v955 = vsel %vm952, %v954, %v950
      %v956 = vmul.f32 %v697, %v955
      %v957 = vrcp.pop %v731
      %v958 = vmul.f32 %v731, %v957
      %v959 = vsub.f32 1.0, %v958
      %v960 = vmul.f32 %v957, %v959
      %v961 = vadd.f32 %v957, %v960
      %vm962 = vweird.f32 %v731
      %vm963 = vweird.f32 %v957
      %vm964 = vmor %vm962, %vm963
      %v965 = vsel %vm964, %v957, %v961
      %v966 = vand.u32 2147483647, %v731
      %vm967 = vcmp.eq.f32.partialorder %v966, 8.507059e+37
      %v968 = vand.u32 %v731, 2147483648
      %v969 = vor.u32 1.1754944e-38, %v968
      %v970 = vsel %vm967, %v969, %v965
      %v971 = vmul.f32 %v699, %v970
      %972 = vst [vmem:[%s172] sm:$0xff] %v746
      %973 = vst [vmem:[%s172 + $0x8] sm:$0xff] %v761
      %974 = vst [vmem:[%s172 + $0x10] sm:$0xff] %v776
      %975 = vst [vmem:[%s172 + $0x18] sm:$0xff] %v791
      %976 = vst [vmem:[%s172 + $0x20] sm:$0xff] %v806
      %977 = vst [vmem:[%s172 + $0x28] sm:$0xff] %v821
      %978 = vst [vmem:[%s172 + $0x30] sm:$0xff] %v836
      %979 = vst [vmem:[%s172 + $0x38] sm:$0xff] %v851
      %980 = vst [vmem:[%s172 + $0x40] sm:$0xff] %v866
      %981 = vst [vmem:[%s172 + $0x48] sm:$0xff] %v881
      %982 = vst [vmem:[%s172 + $0x50] sm:$0xff] %v896
      %983 = vst [vmem:[%s172 + $0x58] sm:$0xff] %v911
      %984 = vst [vmem:[%s172 + $0x60] sm:$0xff] %v926
      %985 = vst [vmem:[%s172 + $0x68] sm:$0xff] %v941
      %986 = vst [vmem:[%s172 + $0x70] sm:$0xff] %v956
      %987 = vst [vmem:[%s172 + $0x78] sm:$0xff] %v971
      %s988 = smul.u32 16, %s14
      %p989 = scmp.lt.s32.totalorder %s988, 31
      %s990 = scalar_select %p989, %s988, 31
      %s991 = smul.addr %s990, 8
      %s992 = scalar_lea.vmem %s3, %s991
      // Predicated region
      $region33: #{policy_forward.1} parent=31 // pred_check
        %p993 = pneg %p100
      $region34: #{policy_forward.1} parent=31 // pred_check_branch
        %995 = sbr.rel (%p993) target = $region36
      $region35: #{policy_forward.1} parent=31 // pred_region
        %s996 = smul.u32 16, %s14
      $region36: #{policy_forward.1} parent=31 // pred_fallthru
        _
    $region32: #{policy_forward.1} parent=5 // pred_fallthru
      _
    %p997 = scmp.le.s32.totalorder 2, %s9
    // Predicated region
    $region37: #{policy_forward.1} parent=5 // pred_check
      %p998 = pneg %p997
    $region38: #{policy_forward.1} parent=5 // pred_check_branch
      %1000 = sbr.rel (%p998) target = $region40
    $region39: #{policy_forward.1} parent=5 // pred_region
      %s1001 = ssub.s32 %s9, 2
      // Predicated region
      $region41: #{policy_forward.1} parent=39 // pred_check
        %p1002 = pneg %p106
      $region42: #{policy_forward.1} parent=39 // pred_check_branch
        %1004 = sbr.rel (%p1002) target = $region44
      $region43: #{policy_forward.1} parent=39 // pred_region
        %s1005 = smul.u32 16, %s15
        %p1006 = scmp.lt.s32.totalorder %s1005, 31
        %s1007 = scalar_select %p1006, %s1005, 31
        %s1008 = smul.addr %s1007, 8
        %s1009 = scalar_lea.vmem %s3, %s1008
      $region44: #{policy_forward.1} parent=39 // pred_fallthru
        _
    $region40: #{policy_forward.1} parent=5 // pred_fallthru
      _
  $region6: #{policy_forward.1} parent=0 // loop_footer
    %s13 = sadd.s32 1, %s9
  $region7: #{policy_forward.1} parent=0 // loop_footer_branch
    %8 = sbr.rel target = $region3
  $region8: #{policy_forward.1} parent=0 // loop_exit
    _

</llo_original>
